<compile_context>
chip_gen: v7x
topology: tpu7x:2x2x1
jax: 0.10.0
libtpu: 0.0.40
codegen_flags: <defaults>
</compile_context>

<pallas_src>
import functools
import math

import jax
import jax.numpy as jnp
from jax.experimental import pallas as pl
from jax.experimental.pallas import tpu as pltpu

_LANE = 128  # lane width; output layer is padded to this for dense stores.


# ----------------------------------------------------------------------------
# Activation helper (traced inside the kernel body).
# ----------------------------------------------------------------------------
def _apply_activation(y, act):
    if act == "relu":
        return jnp.maximum(y, 0.0)
    elif act == "tanh":
        return jnp.tanh(y)
    elif act == "sigmoid":
        return jax.nn.sigmoid(y)
    elif act == "silu":
        return y * jax.nn.sigmoid(y)
    elif act == "gelu":
        # PyTorch nn.GELU default is the exact erf form.
        return jax.nn.gelu(y, approximate=False)
    elif act == "leaky_relu":
        return jnp.where(y >= 0.0, y, 0.01 * y)
    else:
        raise ValueError(f"Unsupported activation function: {act}")


# ----------------------------------------------------------------------------
# Fused whole-network kernel: one batch tile per grid step.
# ----------------------------------------------------------------------------
def _fused_mlp_kernel(*refs, act, num_act_layers):
    """refs = (x_ref,
               w_0, b_0, ..., w_{L-1}, b_{L-1},   # BN-folded Linear blocks
               w_out, b_out,                      # lane-padded output layer
               o_ref)."""
    x_ref = refs[0]
    o_ref = refs[-1]
    p = refs[1:-1]

    h = x_ref[...].astype(jnp.float32)
    # Straight-line unrolled layers (dims differ per layer; gives the LLO
    # scheduler full visibility to overlap MXU drains with VPU/EUP epilogues).
    for li in range(num_act_layers):
        w = p[2 * li][...]
        b = p[2 * li + 1][...]
        h = jnp.dot(h, w, preferred_element_type=jnp.float32) + b
        h = _apply_activation(h, act)
        # Dropout(0.2) == identity in eval mode.

    w_out = p[2 * num_act_layers][...]
    b_out = p[2 * num_act_layers + 1][...]
    y = jnp.dot(h, w_out, preferred_element_type=jnp.float32) + b_out
    o_ref[...] = jax.nn.sigmoid(y).astype(o_ref.dtype)


# ----------------------------------------------------------------------------
# Parameter construction (mirrors nn.Linear / nn.BatchNorm1d init) with
# eval-mode BatchNorm folded into the Linear weights at init time.
# ----------------------------------------------------------------------------
def _init_linear(key, fan_in, fan_out):
    # PyTorch nn.Linear default: U(-1/sqrt(fan_in), 1/sqrt(fan_in)) for W, b.
    kw, kb = jax.random.split(key)
    bound = 1.0 / math.sqrt(fan_in)
    w = jax.random.uniform(kw, (fan_in, fan_out), jnp.float32, -bound, bound)
    b = jax.random.uniform(kb, (fan_out,), jnp.float32, -bound, bound)
    return w, b


def _bn_affine(num_features, eps=1e-5):
    # BatchNorm1d init: gamma=1, beta=0, running_mean=0, running_var=1.
    gamma = jnp.ones((num_features,), jnp.float32)
    beta = jnp.zeros((num_features,), jnp.float32)
    running_mean = jnp.zeros((num_features,), jnp.float32)
    running_var = jnp.ones((num_features,), jnp.float32)
    scale = gamma / jnp.sqrt(running_var + eps)
    shift = beta - running_mean * scale
    return scale, shift


def init_dnn_params(key, input_dim, hidden_layer):
    dims = [input_dim, 56] + list(hidden_layer)
    keys = jax.random.split(key, len(dims))  # (len(dims)-1) blocks + output

    folded = []
    for i in range(len(dims) - 1):
        w, b = _init_linear(keys[i], dims[i], dims[i + 1])
        scale, shift = _bn_affine(dims[i + 1])
        w_f = w * scale[None, :]               # fold BN into the weights
        b_f = (b * scale + shift).reshape(1, -1)
        folded.append((w_f, b_f))

    # Output layer Linear(hidden[-1], 1): zero-pad to 128 output columns so
    # the final store is a full-width unmasked vst; wrapper slices column 0.
    wo, bo = _init_linear(keys[-1], dims[-1], 1)
    wo_pad = jnp.zeros((dims[-1], _LANE), jnp.float32).at[:, :1].set(wo)
    bo_pad = jnp.zeros((1, _LANE), jnp.float32).at[:, 0].set(bo)

    return {"layers": folded, "out": (wo_pad, bo_pad)}


# ----------------------------------------------------------------------------
# Forward wrapper: single fused pallas_call, batch-tiled parallel grid.
# ----------------------------------------------------------------------------
def dnn_forward(params, x, activation_func, *, batch_tile=512):
    B, Din = x.shape
    layers = params["layers"]
    wo, bo = params["out"]
    num_act_layers = len(layers)

    # Batch tile: multiple of 8 sublanes, at most `batch_tile`; pad B up.
    tb = min(batch_tile, -(-B // 8) * 8)
    tb = max(8, (tb // 8) * 8)
    b_pad = -(-B // tb) * tb
    if b_pad != B:
        x = jnp.pad(x, ((0, b_pad - B), (0, 0)))
    n_tiles = b_pad // tb

    flat_params = []
    for (w, b) in layers:
        flat_params += [w, b]
    flat_params += [wo, bo]

    def tile_map(i):
        return (i, 0)

    def const_map(i):
        return (0, 0)

    in_specs = [pl.BlockSpec((tb, Din), tile_map)]
    for arr in flat_params:
        # Whole-array blocks, constant block index -> resident across tiles.
        in_specs.append(pl.BlockSpec(arr.shape, const_map))
    out_specs = pl.BlockSpec((tb, _LANE), tile_map)

    # Advisory cost estimate for the XLA scheduler.
    dims_chain = [Din] + [w.shape[1] for (w, _) in layers] + [_LANE]
    flops = 2 * b_pad * sum(a * c for a, c in zip(dims_chain[:-1], dims_chain[1:]))
    transcendentals = b_pad * _LANE  # output sigmoid (activation may add more)
    bytes_accessed = 4 * (b_pad * Din + sum(a.size for a in flat_params)
                          + b_pad * _LANE)

    kernel = functools.partial(_fused_mlp_kernel, act=activation_func,
                               num_act_layers=num_act_layers)
    out_padded = pl.pallas_call(
        kernel,
        out_shape=jax.ShapeDtypeStruct((b_pad, _LANE), x.dtype),
        grid=(n_tiles,),
        in_specs=in_specs,
        out_specs=out_specs,
        compiler_params=pltpu.CompilerParams(
            dimension_semantics=("parallel",)),
        cost_estimate=pl.CostEstimate(flops=flops,
                                      transcendentals=transcendentals,
                                      bytes_accessed=bytes_accessed),
    )(x, *flat_params)

    return out_padded[:B, :1]


# ----------------------------------------------------------------------------
# Demo / smoke test.
# ----------------------------------------------------------------------------
if __name__ == "__main__":
    input_dim = 20
    hidden_layer = (32, 16)
    activation_func = "relu"
    batch = 8

    key = jax.random.PRNGKey(0)
    k_params, k_x = jax.random.split(key)

    params = init_dnn_params(k_params, input_dim, hidden_layer)
    x = jax.random.normal(k_x, (batch, input_dim), dtype=jnp.float32)

    out = dnn_forward(params, x, activation_func)
    out = jax.block_until_ready(out)

    assert out.shape == (batch, 1), out.shape
    assert bool(jnp.all((out >= 0.0) & (out <= 1.0)))
    print("KERNEL_OK")
</pallas_src>

<mosaic_0001>
module attributes {stable_mosaic.version = 11 : i64} {
  func.func @_fused_mlp_kernel(%arg0: i32, %arg1: memref<8x20xf32, #tpu.memory_space<vmem>>, %arg2: memref<20x56xf32, #tpu.memory_space<vmem>>, %arg3: memref<1x56xf32, #tpu.memory_space<vmem>>, %arg4: memref<56x32xf32, #tpu.memory_space<vmem>>, %arg5: memref<1x32xf32, #tpu.memory_space<vmem>>, %arg6: memref<32x16xf32, #tpu.memory_space<vmem>>, %arg7: memref<1x16xf32, #tpu.memory_space<vmem>>, %arg8: memref<16x128xf32, #tpu.memory_space<vmem>>, %arg9: memref<1x128xf32, #tpu.memory_space<vmem>>, %arg10: memref<8x128xf32, #tpu.memory_space<vmem>>) attributes {dimension_semantics = [#tpu.dimension_semantics<parallel>], iteration_bounds = array<i64: 1>, scalar_prefetch = 0 : i64, scratch_operands = 0 : i64, tpu.core_type = #tpu.core_type<tc>, window_params = [{transform_indices = @transform_0, window_bounds = array<i64: 8, 20>}, {pipeline_mode = #tpu.pipeline_mode<synchronous>, transform_indices = @transform_1, window_bounds = array<i64: 20, 56>}, {pipeline_mode = #tpu.pipeline_mode<synchronous>, transform_indices = @transform_2, window_bounds = array<i64: 1, 56>}, {pipeline_mode = #tpu.pipeline_mode<synchronous>, transform_indices = @transform_3, window_bounds = array<i64: 56, 32>}, {pipeline_mode = #tpu.pipeline_mode<synchronous>, transform_indices = @transform_4, window_bounds = array<i64: 1, 32>}, {pipeline_mode = #tpu.pipeline_mode<synchronous>, transform_indices = @transform_5, window_bounds = array<i64: 32, 16>}, {pipeline_mode = #tpu.pipeline_mode<synchronous>, transform_indices = @transform_6, window_bounds = array<i64: 1, 16>}, {pipeline_mode = #tpu.pipeline_mode<synchronous>, transform_indices = @transform_7, window_bounds = array<i64: 16, 128>}, {pipeline_mode = #tpu.pipeline_mode<synchronous>, transform_indices = @transform_8, window_bounds = array<i64: 1, 128>}, {transform_indices = @transform_9, window_bounds = array<i64: 8, 128>}]} {
    %c0 = arith.constant 0 : index
    %c0_0 = arith.constant 0 : index
    %0 = vector.load %arg1[%c0, %c0_0] : memref<8x20xf32, #tpu.memory_space<vmem>>, vector<8x20xf32>
    %c0_1 = arith.constant 0 : index
    %c0_2 = arith.constant 0 : index
    %1 = vector.load %arg2[%c0_1, %c0_2] : memref<20x56xf32, #tpu.memory_space<vmem>>, vector<20x56xf32>
    %c0_3 = arith.constant 0 : index
    %c0_4 = arith.constant 0 : index
    %2 = vector.load %arg3[%c0_3, %c0_4] : memref<1x56xf32, #tpu.memory_space<vmem>>, vector<1x56xf32>
    %cst = arith.constant dense<0.000000e+00> : vector<8x56xf32>
    %3 = tpu.matmul %0, %1, %cst {dimension_numbers = #tpu.dot_dimension_numbers<[1], [0], [0], [1], [0, 0, 1, 1], [], []>} : vector<8x20xf32>, vector<20x56xf32>, vector<8x56xf32> -> vector<8x56xf32>
    %4 = vector.broadcast %2 : vector<1x56xf32> to vector<8x56xf32>
    %5 = arith.addf %3, %4 : vector<8x56xf32>
    %cst_5 = arith.constant 0.000000e+00 : f32
    %6 = vector.broadcast %cst_5 : f32 to vector<8x56xf32>
    %7 = arith.maximumf %5, %6 : vector<8x56xf32>
    %c0_6 = arith.constant 0 : index
    %c0_7 = arith.constant 0 : index
    %8 = vector.load %arg4[%c0_6, %c0_7] : memref<56x32xf32, #tpu.memory_space<vmem>>, vector<56x32xf32>
    %c0_8 = arith.constant 0 : index
    %c0_9 = arith.constant 0 : index
    %9 = vector.load %arg5[%c0_8, %c0_9] : memref<1x32xf32, #tpu.memory_space<vmem>>, vector<1x32xf32>
    %cst_10 = arith.constant dense<0.000000e+00> : vector<8x32xf32>
    %10 = tpu.matmul %7, %8, %cst_10 {dimension_numbers = #tpu.dot_dimension_numbers<[1], [0], [0], [1], [0, 0, 1, 1], [], []>} : vector<8x56xf32>, vector<56x32xf32>, vector<8x32xf32> -> vector<8x32xf32>
    %11 = vector.broadcast %9 : vector<1x32xf32> to vector<8x32xf32>
    %12 = arith.addf %10, %11 : vector<8x32xf32>
    %cst_11 = arith.constant 0.000000e+00 : f32
    %13 = vector.broadcast %cst_11 : f32 to vector<8x32xf32>
    %14 = arith.maximumf %12, %13 : vector<8x32xf32>
    %c0_12 = arith.constant 0 : index
    %c0_13 = arith.constant 0 : index
    %15 = vector.load %arg6[%c0_12, %c0_13] : memref<32x16xf32, #tpu.memory_space<vmem>>, vector<32x16xf32>
    %c0_14 = arith.constant 0 : index
    %c0_15 = arith.constant 0 : index
    %16 = vector.load %arg7[%c0_14, %c0_15] : memref<1x16xf32, #tpu.memory_space<vmem>>, vector<1x16xf32>
    %cst_16 = arith.constant dense<0.000000e+00> : vector<8x16xf32>
    %17 = tpu.matmul %14, %15, %cst_16 {dimension_numbers = #tpu.dot_dimension_numbers<[1], [0], [0], [1], [0, 0, 1, 1], [], []>} : vector<8x32xf32>, vector<32x16xf32>, vector<8x16xf32> -> vector<8x16xf32>
    %18 = vector.broadcast %16 : vector<1x16xf32> to vector<8x16xf32>
    %19 = arith.addf %17, %18 : vector<8x16xf32>
    %cst_17 = arith.constant 0.000000e+00 : f32
    %20 = vector.broadcast %cst_17 : f32 to vector<8x16xf32>
    %21 = arith.maximumf %19, %20 : vector<8x16xf32>
    %c0_18 = arith.constant 0 : index
    %c0_19 = arith.constant 0 : index
    %22 = vector.load %arg8[%c0_18, %c0_19] : memref<16x128xf32, #tpu.memory_space<vmem>>, vector<16x128xf32>
    %c0_20 = arith.constant 0 : index
    %c0_21 = arith.constant 0 : index
    %23 = vector.load %arg9[%c0_20, %c0_21] : memref<1x128xf32, #tpu.memory_space<vmem>>, vector<1x128xf32>
    %cst_22 = arith.constant dense<0.000000e+00> : vector<8x128xf32>
    %24 = tpu.matmul %21, %22, %cst_22 {dimension_numbers = #tpu.dot_dimension_numbers<[1], [0], [0], [1], [0, 0, 1, 1], [], []>} : vector<8x16xf32>, vector<16x128xf32>, vector<8x128xf32> -> vector<8x128xf32>
    %25 = vector.broadcast %23 : vector<1x128xf32> to vector<8x128xf32>
    %26 = arith.addf %24, %25 : vector<8x128xf32>
    %27 = arith.negf %26 : vector<8x128xf32>
    %28 = math.exp %27 : vector<8x128xf32>
    %cst_23 = arith.constant 1.000000e+00 : f32
    %29 = vector.broadcast %cst_23 : f32 to vector<8x128xf32>
    %30 = arith.addf %29, %28 : vector<8x128xf32>
    %31 = arith.divf %29, %30 : vector<8x128xf32>
    %c0_24 = arith.constant 0 : index
    %c0_25 = arith.constant 0 : index
    %32 = vector.load %arg10[%c0_24, %c0_25] : memref<8x128xf32, #tpu.memory_space<vmem>>, vector<8x128xf32>
    tpu.vector_store %arg10[%c0_24, %c0_25], %31 {strides = array<i32>} : memref<8x128xf32, #tpu.memory_space<vmem>>, vector<8x128xf32>,
    return
  }
  func.func @transform_0(%arg0: i32) -> (i32, i32) {
    %c0_i32 = arith.constant 0 : i32
    %c0_i32_0 = arith.constant 0 : i32
    return %arg0, %c0_i32 : i32, i32
  }
  func.func @transform_1(%arg0: i32) -> (i32, i32) {
    %c0_i32 = arith.constant 0 : i32
    %c0_i32_0 = arith.constant 0 : i32
    %c0_i32_1 = arith.constant 0 : i32
    return %c0_i32, %c0_i32_0 : i32, i32
  }
  func.func @transform_2(%arg0: i32) -> (i32, i32) {
    %c0_i32 = arith.constant 0 : i32
    %c0_i32_0 = arith.constant 0 : i32
    %c0_i32_1 = arith.constant 0 : i32
    return %c0_i32, %c0_i32_0 : i32, i32
  }
  func.func @transform_3(%arg0: i32) -> (i32, i32) {
    %c0_i32 = arith.constant 0 : i32
    %c0_i32_0 = arith.constant 0 : i32
    %c0_i32_1 = arith.constant 0 : i32
    return %c0_i32, %c0_i32_0 : i32, i32
  }
  func.func @transform_4(%arg0: i32) -> (i32, i32) {
    %c0_i32 = arith.constant 0 : i32
    %c0_i32_0 = arith.constant 0 : i32
    %c0_i32_1 = arith.constant 0 : i32
    return %c0_i32, %c0_i32_0 : i32, i32
  }
  func.func @transform_5(%arg0: i32) -> (i32, i32) {
    %c0_i32 = arith.constant 0 : i32
    %c0_i32_0 = arith.constant 0 : i32
    %c0_i32_1 = arith.constant 0 : i32
    return %c0_i32, %c0_i32_0 : i32, i32
  }
  func.func @transform_6(%arg0: i32) -> (i32, i32) {
    %c0_i32 = arith.constant 0 : i32
    %c0_i32_0 = arith.constant 0 : i32
    %c0_i32_1 = arith.constant 0 : i32
    return %c0_i32, %c0_i32_0 : i32, i32
  }
  func.func @transform_7(%arg0: i32) -> (i32, i32) {
    %c0_i32 = arith.constant 0 : i32
    %c0_i32_0 = arith.constant 0 : i32
    %c0_i32_1 = arith.constant 0 : i32
    return %c0_i32, %c0_i32_0 : i32, i32
  }
  func.func @transform_8(%arg0: i32) -> (i32, i32) {
    %c0_i32 = arith.constant 0 : i32
    %c0_i32_0 = arith.constant 0 : i32
    %c0_i32_1 = arith.constant 0 : i32
    return %c0_i32, %c0_i32_0 : i32, i32
  }
  func.func @transform_9(%arg0: i32) -> (i32, i32) {
    %c0_i32 = arith.constant 0 : i32
    %c0_i32_0 = arith.constant 0 : i32
    return %arg0, %c0_i32 : i32, i32
  }
}

</mosaic_0001>

<llo_original>
// kernel: tpu_custom_call.1
$region0: #{tpu_custom_call.1}
  #allocation0 [shape = 'u32[]', space=smem, size = 0x4, offset = 0x4, fixed_abs, tag = 'smem constant byte address 0x4 - core index']
  #allocation1 [shape = 'u32[144,128]{1,0:T(1,128)}', space=vmem, size = 0x12000, scoped, tag = 'internal scratch']
  %s0 = inlined_call_operand.vmem [shape: f32[8,20], index: 0, kind: input, shape index: {}]
  %s1 = inlined_call_operand.vmem [shape: f32[20,56], index: 1, kind: input, shape index: {}]
  %s2 = inlined_call_operand.vmem [shape: f32[1,56], index: 2, kind: input, shape index: {}]
  %s3 = inlined_call_operand.vmem [shape: f32[56,32], index: 3, kind: input, shape index: {}]
  %s4 = inlined_call_operand.vmem [shape: f32[1,32], index: 4, kind: input, shape index: {}]
  %s5 = inlined_call_operand.vmem [shape: f32[32,16], index: 5, kind: input, shape index: {}]
  %s6 = inlined_call_operand.vmem [shape: f32[1,16], index: 6, kind: input, shape index: {}]
  %s7 = inlined_call_operand.vmem [shape: f32[16,128], index: 7, kind: input, shape index: {}]
  %s8 = inlined_call_operand.vmem [shape: f32[1,128], index: 8, kind: input, shape index: {}]
  %s9 = inlined_call_operand.hbm [shape: f32[8,128], index: 9, kind: output, shape index: {}]
  %s10 = sld [smem:[#allocation0]]
  $region46: #{tpu_custom_call.1} parent=0
    _
  %s12 = ssub.s32 1, %s10
  %s13 = scalar_select 0, %s12, %s10
  $region1: #{tpu_custom_call.1} parent=0
    #allocation2 [shape = 'u8[4096]{0}', space=vmem, size = 0x1000, scoped, tag = 'output window, operand 0, single buffered']
    #allocation3 [shape = 's32[1]{0}', space=sflag, size = 0x4, scoped, tag = 'scoped memory for tpu_custom_call.1']
    %14 = vsyncpa [#allocation3], 0
    // Predicated region
    $region2: #{tpu_custom_call.1} parent=1 // pred_check
      _
    $region3: #{tpu_custom_call.1} parent=1 // pred_check_branch
      %16 = sbr.rel (0) target = $region5
    $region4: #{tpu_custom_call.1} parent=1 // pred_region
      _
    $region5: #{tpu_custom_call.1} parent=1 // pred_fallthru
      _
    // Predicated region
    $region6: #{tpu_custom_call.1} parent=1 // pred_check
      _
    $region7: #{tpu_custom_call.1} parent=1 // pred_check_branch
      %18 = sbr.rel (0) target = $region9
    $region8: #{tpu_custom_call.1} parent=1 // pred_region
      _
    $region9: #{tpu_custom_call.1} parent=1 // pred_fallthru
      _
    // Predicated region
    $region10: #{tpu_custom_call.1} parent=1 // pred_check
      _
    $region11: #{tpu_custom_call.1} parent=1 // pred_check_branch
      %20 = sbr.rel (0) target = $region13
    $region12: #{tpu_custom_call.1} parent=1 // pred_region
      _
    $region13: #{tpu_custom_call.1} parent=1 // pred_fallthru
      _
    // Predicated region
    $region14: #{tpu_custom_call.1} parent=1 // pred_check
      _
    $region15: #{tpu_custom_call.1} parent=1 // pred_check_branch
      %22 = sbr.rel (0) target = $region17
    $region16: #{tpu_custom_call.1} parent=1 // pred_region
      _
    $region17: #{tpu_custom_call.1} parent=1 // pred_fallthru
      _
    // Predicated region
    $region18: #{tpu_custom_call.1} parent=1 // pred_check
      _
    $region19: #{tpu_custom_call.1} parent=1 // pred_check_branch
      %24 = sbr.rel (0) target = $region21
    $region20: #{tpu_custom_call.1} parent=1 // pred_region
      _
    $region21: #{tpu_custom_call.1} parent=1 // pred_fallthru
      _
    // Predicated region
    $region22: #{tpu_custom_call.1} parent=1 // pred_check
      _
    $region23: #{tpu_custom_call.1} parent=1 // pred_check_branch
      %26 = sbr.rel (0) target = $region25
    $region24: #{tpu_custom_call.1} parent=1 // pred_region
      _
    $region25: #{tpu_custom_call.1} parent=1 // pred_fallthru
      _
    // Predicated region
    $region26: #{tpu_custom_call.1} parent=1 // pred_check
      _
    $region27: #{tpu_custom_call.1} parent=1 // pred_check_branch
      %28 = sbr.rel (0) target = $region29
    $region28: #{tpu_custom_call.1} parent=1 // pred_region
      _
    $region29: #{tpu_custom_call.1} parent=1 // pred_fallthru
      _
    // Predicated region
    $region30: #{tpu_custom_call.1} parent=1 // pred_check
      _
    $region31: #{tpu_custom_call.1} parent=1 // pred_check_branch
      %30 = sbr.rel (0) target = $region33
    $region32: #{tpu_custom_call.1} parent=1 // pred_region
      _
    $region33: #{tpu_custom_call.1} parent=1 // pred_fallthru
      _
    // Predicated region
    $region34: #{tpu_custom_call.1} parent=1 // pred_check
      _
    $region35: #{tpu_custom_call.1} parent=1 // pred_check_branch
      %32 = sbr.rel (0) target = $region37
    $region36: #{tpu_custom_call.1} parent=1 // pred_region
      _
    $region37: #{tpu_custom_call.1} parent=1 // pred_fallthru
      _
    %v33 = vld [vmem:[%s0] sm:$0xff]
    %v34 = vld [vmem:[%s1] sm:$0xff]
    %v35 = vld [vmem:[%s1 + $0x8] sm:$0xff]
    %v36 = vld [vmem:[%s1 + $0x10] sm:$0xf]
    %v37 = vld [vmem:[%s2] sm:$0x1]
    %v39 = vlaneseq
    %v40 = vshrl.u32 %v39, 7
    %v41 = vsub.s32 0, %v40
    %v42 = vrot.slane %v37, %v41
    %vm44 = vcmask 162816
    %v46 = vsel %vm44, %v33, 0
    %vm48 = vcmask 1043456
    %v50 = vsel %vm48, %v36, 0
    %52 = vmatprep.subr.mxu0 0.0
    %53 = vmatpush1.msra.mxu0 %v34
    %54 = vmatprep.subr.mxu0 0.0
    %55 = vmatpush1.msra.mxu0 %v35
    %56 = vmatprep.subr.mxu0 0.0
    %57 = vmatpush1.msra.mxu0 %v50
    %58 = vmatprep.subr.mxu0 0.0
    %59 = vmatpush1.msra.mxu0 0.0
    %60 = vmatprep.subr.mxu0 0.0
    %61 = vmatpush1.msra.mxu0 0.0
    %62 = vmatprep.subr.mxu0 0.0
    %63 = vmatpush1.msra.mxu0 0.0
    %64 = vmatprep.subr.mxu0 0.0
    %65 = vmatpush1.msra.mxu0 0.0
    %66 = vmatprep.subr.mxu0 0.0
    %67 = vmatpush1.msra.mxu0 0.0
    %68 = vmatprep.subr.mxu0 0.0
    %69 = vmatpush1.msra.mxu0 0.0
    %70 = vmatprep.subr.mxu0 0.0
    %71 = vmatpush1.msra.mxu0 0.0
    %72 = vmatprep.subr.mxu0 0.0
    %73 = vmatpush1.msra.mxu0 0.0
    %74 = vmatprep.subr.mxu0 0.0
    %75 = vmatpush1.msra.mxu0 0.0
    %76 = vmatprep.subr.mxu0 0.0
    %77 = vmatpush1.msra.mxu0 0.0
    %78 = vmatprep.subr.mxu0 0.0
    %79 = vmatpush1.msra.mxu0 0.0
    %80 = vmatprep.subr.mxu0 0.0
    %81 = vmatpush1.msra.mxu0 0.0
    %82 = vmatprep.subr.mxu0 0.0
    %83 = vmatpush1.msra.mxu0 0.0
    %84 = vmatprep.subr.mxu0 0.0
    %85 = vmatpush1.msra.mxu0 0.0
    %86 = vmatprep.subr.mxu0 0.0
    %87 = vmatpush1.msra.mxu0 0.0
    %88 = vmatprep.subr.mxu0 0.0
    %89 = vmatpush1.msra.mxu0 0.0
    %90 = vmatprep.subr.mxu0 0.0
    %91 = vmatpush1.msra.mxu0 0.0
    %92 = vmatprep.subr.mxu0 0.0
    %93 = vmatpush1.msra.mxu0 0.0
    %94 = vmatprep.subr.mxu0 0.0
    %95 = vmatpush1.msra.mxu0 0.0
    %96 = vmatprep.subr.mxu0 0.0
    %97 = vmatpush1.msra.mxu0 0.0
    %98 = vmatprep.subr.mxu0 0.0
    %99 = vmatpush1.msra.mxu0 0.0
    %100 = vmatprep.subr.mxu0 0.0
    %101 = vmatpush1.msra.mxu0 0.0
    %102 = vmatprep.subr.mxu0 0.0
    %103 = vmatpush1.msra.mxu0 0.0
    %104 = vmatprep.subr.mxu0 0.0
    %105 = vmatpush1.msra.mxu0 0.0
    %106 = vmatprep.subr.mxu0 0.0
    %107 = vmatpush1.msra.mxu0 0.0
    %108 = vmatprep.subr.mxu0 0.0
    %109 = vmatpush1.msra.mxu0 0.0
    %110 = vmatprep.subr.mxu0 0.0
    %111 = vmatpush1.msra.mxu0 0.0
    %112 = vmatprep.subr.mxu0 0.0
    %113 = vmatpush1.msra.mxu0 0.0
    %114 = vmatprep.subr.mxu0 0.0
    %115 = vmatpush1.msra.mxu0 0.0
    %116 = vmatprep.mubr.f32.mxu0 0.0
    %117 = vmatmul.mubr.f32.gmra.mrb[0].mxu0 %v46
    %v118 = vpop.f32.mrb[0].mxu0
    %v119 = vadd.f32 %v42, %v118
    %v120 = vpop.f32.mrb[0].mxu0
    %121 = vdwg.mxu0
    %v122 = vmax.f32 %v119, 0.0
    %v123 = vld [vmem:[%s3] sm:$0xff]
    %v124 = vld [vmem:[%s3 + $0x8] sm:$0xff]
    %v125 = vld [vmem:[%s3 + $0x10] sm:$0xff]
    %v126 = vld [vmem:[%s3 + $0x18] sm:$0xff]
    %v127 = vld [vmem:[%s3 + $0x20] sm:$0xff]
    %v128 = vld [vmem:[%s3 + $0x28] sm:$0xff]
    %v129 = vld [vmem:[%s3 + $0x30] sm:$0xff]
    %v130 = vld [vmem:[%s4] sm:$0x1]
    %v132 = vlaneseq
    %v133 = vshrl.u32 %v132, 7
    %v134 = vsub.s32 0, %v133
    %v135 = vrot.slane %v130, %v134
    %vm137 = vcmask 457728
    %v139 = vsel %vm137, %v122, 0
    %141 = vmatprep.subr.mxu0 0.0
    %142 = vmatpush1.msra.mxu0 %v123
    %143 = vmatprep.subr.mxu0 0.0
    %144 = vmatpush1.msra.mxu0 %v124
    %145 = vmatprep.subr.mxu0 0.0
    %146 = vmatpush1.msra.mxu0 %v125
    %147 = vmatprep.subr.mxu0 0.0
    %148 = vmatpush1.msra.mxu0 %v126
    %149 = vmatprep.subr.mxu0 0.0
    %150 = vmatpush1.msra.mxu0 %v127
    %151 = vmatprep.subr.mxu0 0.0
    %152 = vmatpush1.msra.mxu0 %v128
    %153 = vmatprep.subr.mxu0 0.0
    %154 = vmatpush1.msra.mxu0 %v129
    %155 = vmatprep.subr.mxu0 0.0
    %156 = vmatpush1.msra.mxu0 0.0
    %157 = vmatprep.subr.mxu0 0.0
    %158 = vmatpush1.msra.mxu0 0.0
    %159 = vmatprep.subr.mxu0 0.0
    %160 = vmatpush1.msra.mxu0 0.0
    %161 = vmatprep.subr.mxu0 0.0
    %162 = vmatpush1.msra.mxu0 0.0
    %163 = vmatprep.subr.mxu0 0.0
    %164 = vmatpush1.msra.mxu0 0.0
    %165 = vmatprep.subr.mxu0 0.0
    %166 = vmatpush1.msra.mxu0 0.0
    %167 = vmatprep.subr.mxu0 0.0
    %168 = vmatpush1.msra.mxu0 0.0
    %169 = vmatprep.subr.mxu0 0.0
    %170 = vmatpush1.msra.mxu0 0.0
    %171 = vmatprep.subr.mxu0 0.0
    %172 = vmatpush1.msra.mxu0 0.0
    %173 = vmatprep.subr.mxu0 0.0
    %174 = vmatpush1.msra.mxu0 0.0
    %175 = vmatprep.subr.mxu0 0.0
    %176 = vmatpush1.msra.mxu0 0.0
    %177 = vmatprep.subr.mxu0 0.0
    %178 = vmatpush1.msra.mxu0 0.0
    %179 = vmatprep.subr.mxu0 0.0
    %180 = vmatpush1.msra.mxu0 0.0
    %181 = vmatprep.subr.mxu0 0.0
    %182 = vmatpush1.msra.mxu0 0.0
    %183 = vmatprep.subr.mxu0 0.0
    %184 = vmatpush1.msra.mxu0 0.0
    %185 = vmatprep.subr.mxu0 0.0
    %186 = vmatpush1.msra.mxu0 0.0
    %187 = vmatprep.subr.mxu0 0.0
    %188 = vmatpush1.msra.mxu0 0.0
    %189 = vmatprep.subr.mxu0 0.0
    %190 = vmatpush1.msra.mxu0 0.0
    %191 = vmatprep.subr.mxu0 0.0
    %192 = vmatpush1.msra.mxu0 0.0
    %193 = vmatprep.subr.mxu0 0.0
    %194 = vmatpush1.msra.mxu0 0.0
    %195 = vmatprep.subr.mxu0 0.0
    %196 = vmatpush1.msra.mxu0 0.0
    %197 = vmatprep.subr.mxu0 0.0
    %198 = vmatpush1.msra.mxu0 0.0
    %199 = vmatprep.subr.mxu0 0.0
    %200 = vmatpush1.msra.mxu0 0.0
    %201 = vmatprep.subr.mxu0 0.0
    %202 = vmatpush1.msra.mxu0 0.0
    %203 = vmatprep.subr.mxu0 0.0
    %204 = vmatpush1.msra.mxu0 0.0
    %205 = vmatprep.mubr.f32.mxu0 0.0
    %206 = vmatmul.mubr.f32.gmra.mrb[0].mxu0 %v139
    %v207 = vpop.f32.mrb[0].mxu0
    %v208 = vadd.f32 %v135, %v207
    %v209 = vpop.f32.mrb[0].mxu0
    %210 = vdwg.mxu0
    %v211 = vmax.f32 %v208, 0.0
    %v212 = vld [vmem:[%s5] sm:$0xff]
    %v213 = vld [vmem:[%s5 + $0x8] sm:$0xff]
    %v214 = vld [vmem:[%s5 + $0x10] sm:$0xff]
    %v215 = vld [vmem:[%s5 + $0x18] sm:$0xff]
    %v216 = vld [vmem:[%s6] sm:$0x1]
    %v218 = vlaneseq
    %v219 = vshrl.u32 %v218, 7
    %v220 = vsub.s32 0, %v219
    %v221 = vrot.slane %v216, %v220
    %vm223 = vcmask 261120
    %v225 = vsel %vm223, %v211, 0
    %227 = vmatprep.subr.mxu0 0.0
    %228 = vmatpush1.msra.mxu0 %v212
    %229 = vmatprep.subr.mxu0 0.0
    %230 = vmatpush1.msra.mxu0 %v213
    %231 = vmatprep.subr.mxu0 0.0
    %232 = vmatpush1.msra.mxu0 %v214
    %233 = vmatprep.subr.mxu0 0.0
    %234 = vmatpush1.msra.mxu0 %v215
    %235 = vmatprep.subr.mxu0 0.0
    %236 = vmatpush1.msra.mxu0 0.0
    %237 = vmatprep.subr.mxu0 0.0
    %238 = vmatpush1.msra.mxu0 0.0
    %239 = vmatprep.subr.mxu0 0.0
    %240 = vmatpush1.msra.mxu0 0.0
    %241 = vmatprep.subr.mxu0 0.0
    %242 = vmatpush1.msra.mxu0 0.0
    %243 = vmatprep.subr.mxu0 0.0
    %244 = vmatpush1.msra.mxu0 0.0
    %245 = vmatprep.subr.mxu0 0.0
    %246 = vmatpush1.msra.mxu0 0.0
    %247 = vmatprep.subr.mxu0 0.0
    %248 = vmatpush1.msra.mxu0 0.0
    %249 = vmatprep.subr.mxu0 0.0
    %250 = vmatpush1.msra.mxu0 0.0
    %251 = vmatprep.subr.mxu0 0.0
    %252 = vmatpush1.msra.mxu0 0.0
    %253 = vmatprep.subr.mxu0 0.0
    %254 = vmatpush1.msra.mxu0 0.0
    %255 = vmatprep.subr.mxu0 0.0
    %256 = vmatpush1.msra.mxu0 0.0
    %257 = vmatprep.subr.mxu0 0.0
    %258 = vmatpush1.msra.mxu0 0.0
    %259 = vmatprep.subr.mxu0 0.0
    %260 = vmatpush1.msra.mxu0 0.0
    %261 = vmatprep.subr.mxu0 0.0
    %262 = vmatpush1.msra.mxu0 0.0
    %263 = vmatprep.subr.mxu0 0.0
    %264 = vmatpush1.msra.mxu0 0.0
    %265 = vmatprep.subr.mxu0 0.0
    %266 = vmatpush1.msra.mxu0 0.0
    %267 = vmatprep.subr.mxu0 0.0
    %268 = vmatpush1.msra.mxu0 0.0
    %269 = vmatprep.subr.mxu0 0.0
    %270 = vmatpush1.msra.mxu0 0.0
    %271 = vmatprep.subr.mxu0 0.0
    %272 = vmatpush1.msra.mxu0 0.0
    %273 = vmatprep.subr.mxu0 0.0
    %274 = vmatpush1.msra.mxu0 0.0
    %275 = vmatprep.subr.mxu0 0.0
    %276 = vmatpush1.msra.mxu0 0.0
    %277 = vmatprep.subr.mxu0 0.0
    %278 = vmatpush1.msra.mxu0 0.0
    %279 = vmatprep.subr.mxu0 0.0
    %280 = vmatpush1.msra.mxu0 0.0
    %281 = vmatprep.subr.mxu0 0.0
    %282 = vmatpush1.msra.mxu0 0.0
    %283 = vmatprep.subr.mxu0 0.0
    %284 = vmatpush1.msra.mxu0 0.0
    %285 = vmatprep.subr.mxu0 0.0
    %286 = vmatpush1.msra.mxu0 0.0
    %287 = vmatprep.subr.mxu0 0.0
    %288 = vmatpush1.msra.mxu0 0.0
    %289 = vmatprep.subr.mxu0 0.0
    %290 = vmatpush1.msra.mxu0 0.0
    %291 = vmatprep.mubr.f32.mxu0 0.0
    %292 = vmatmul.mubr.f32.gmra.mrb[0].mxu0 %v225
    %v293 = vpop.f32.mrb[0].mxu0
    %v294 = vadd.f32 %v221, %v293
    %v295 = vpop.f32.mrb[0].mxu0
    %296 = vdwg.mxu0
    %v297 = vmax.f32 %v294, 0.0
    %v298 = vld [vmem:[%s7] sm:$0xff]
    %v299 = vld [vmem:[%s7 + $0x8] sm:$0xff]
    %v300 = vld [vmem:[%s8] sm:$0x1]
    %v302 = vlaneseq
    %v303 = vshrl.u32 %v302, 7
    %v304 = vsub.s32 0, %v303
    %v305 = vrot.slane %v300, %v304
    %vm307 = vcmask 130048
    %v309 = vsel %vm307, %v297, 0
    %311 = vmatprep.subr.mxu0 0.0
    %312 = vmatpush1.msra.mxu0 %v298
    %313 = vmatprep.subr.mxu0 0.0
    %314 = vmatpush1.msra.mxu0 %v299
    %315 = vmatprep.subr.mxu0 0.0
    %316 = vmatpush1.msra.mxu0 0.0
    %317 = vmatprep.subr.mxu0 0.0
    %318 = vmatpush1.msra.mxu0 0.0
    %319 = vmatprep.subr.mxu0 0.0
    %320 = vmatpush1.msra.mxu0 0.0
    %321 = vmatprep.subr.mxu0 0.0
    %322 = vmatpush1.msra.mxu0 0.0
    %323 = vmatprep.subr.mxu0 0.0
    %324 = vmatpush1.msra.mxu0 0.0
    %325 = vmatprep.subr.mxu0 0.0
    %326 = vmatpush1.msra.mxu0 0.0
    %327 = vmatprep.subr.mxu0 0.0
    %328 = vmatpush1.msra.mxu0 0.0
    %329 = vmatprep.subr.mxu0 0.0
    %330 = vmatpush1.msra.mxu0 0.0
    %331 = vmatprep.subr.mxu0 0.0
    %332 = vmatpush1.msra.mxu0 0.0
    %333 = vmatprep.subr.mxu0 0.0
    %334 = vmatpush1.msra.mxu0 0.0
    %335 = vmatprep.subr.mxu0 0.0
    %336 = vmatpush1.msra.mxu0 0.0
    %337 = vmatprep.subr.mxu0 0.0
    %338 = vmatpush1.msra.mxu0 0.0
    %339 = vmatprep.subr.mxu0 0.0
    %340 = vmatpush1.msra.mxu0 0.0
    %341 = vmatprep.subr.mxu0 0.0
    %342 = vmatpush1.msra.mxu0 0.0
    %343 = vmatprep.subr.mxu0 0.0
    %344 = vmatpush1.msra.mxu0 0.0
    %345 = vmatprep.subr.mxu0 0.0
    %346 = vmatpush1.msra.mxu0 0.0
    %347 = vmatprep.subr.mxu0 0.0
    %348 = vmatpush1.msra.mxu0 0.0
    %349 = vmatprep.subr.mxu0 0.0
    %350 = vmatpush1.msra.mxu0 0.0
    %351 = vmatprep.subr.mxu0 0.0
    %352 = vmatpush1.msra.mxu0 0.0
    %353 = vmatprep.subr.mxu0 0.0
    %354 = vmatpush1.msra.mxu0 0.0
    %355 = vmatprep.subr.mxu0 0.0
    %356 = vmatpush1.msra.mxu0 0.0
    %357 = vmatprep.subr.mxu0 0.0
    %358 = vmatpush1.msra.mxu0 0.0
    %359 = vmatprep.subr.mxu0 0.0
    %360 = vmatpush1.msra.mxu0 0.0
    %361 = vmatprep.subr.mxu0 0.0
    %362 = vmatpush1.msra.mxu0 0.0
    %363 = vmatprep.subr.mxu0 0.0
    %364 = vmatpush1.msra.mxu0 0.0
    %365 = vmatprep.subr.mxu0 0.0
    %366 = vmatpush1.msra.mxu0 0.0
    %367 = vmatprep.subr.mxu0 0.0
    %368 = vmatpush1.msra.mxu0 0.0
    %369 = vmatprep.subr.mxu0 0.0
    %370 = vmatpush1.msra.mxu0 0.0
    %371 = vmatprep.subr.mxu0 0.0
    %372 = vmatpush1.msra.mxu0 0.0
    %373 = vmatprep.subr.mxu0 0.0
    %374 = vmatpush1.msra.mxu0 0.0
    %375 = vmatprep.mubr.f32.mxu0 0.0
    %376 = vmatmul.mubr.f32.gmra.mrb[0].mxu0 %v309
    %v377 = vpop.f32.mrb[0].mxu0
    %v378 = vadd.f32 %v305, %v377
    %v379 = vpop.f32.mrb[0].mxu0
    %380 = vdwg.mxu0
    %v381 = vxor.u32 %v378, 2147483648
    %v382 = vmul.f32 %v381, 1.442695
    %v383 = vpow.pop %v382
    %v384 = vadd.f32 %v383, 1.0
    %v385 = vrcp.pop %v384
    %v386 = vmul.f32 1.0, %v385
    %387 = vst [vmem:[#allocation2] sm:$0xff] %v386
    // Predicated region
    $region38: #{tpu_custom_call.1} parent=1 // pred_check
      _
    $region39: #{tpu_custom_call.1} parent=1 // pred_check_branch
      %389 = sbr.rel (0) target = $region41
    $region40: #{tpu_custom_call.1} parent=1 // pred_region
      %s391 = ssub.s32 128, 128
      %392 = vsyncadd [#allocation3], %s391
      %s394 = sshll.u32 [#allocation2], 4
      %s395 = int_to_ptr.vmem [resolvable:$true] %s394
      %397 = dma.vmem_to_hbm [thread:$0]  %s395, 128, %s9, [#allocation3]
    $region41: #{tpu_custom_call.1} parent=1 // pred_fallthru
      _
    // Predicated region
    $region42: #{tpu_custom_call.1} parent=1 // pred_check
      _
    $region43: #{tpu_custom_call.1} parent=1 // pred_check_branch
      %399 = sbr.rel (0) target = $region45
    $region44: #{tpu_custom_call.1} parent=1 // pred_region
      %400 = dma.done [#allocation3], 128
    $region45: #{tpu_custom_call.1} parent=1 // pred_fallthru
      _
    %401 = vsyncpa [#allocation3], 1

</llo_original>
